<compile_context>
chip_gen: v7x
topology: tpu7x:2x2x1
jax: 0.10.0
libtpu: 0.0.40
codegen_flags: <defaults>
</compile_context>

<pallas_src>
import functools

import jax
import jax.numpy as jnp
from jax.experimental import pallas as pl
from jax.experimental.pallas import tpu as pltpu


def _elu(x, alpha):
    # ELU(x) = x if x>0 else alpha*(exp(x)-1); clamp exp arg so the unselected
    # branch never produces inf/nan.
    return jnp.where(x > 0, x, alpha * (jnp.exp(jnp.minimum(x, 0.0)) - 1.0))


# ------------- fused stage kernel: 1x1 conv -> ELU(1) -> dw3x3 (+ELU) -------------
# Also accumulates per-channel sum / sum-of-squares of the stage output so the
# following BatchNorm can be folded into the next stage's 1x1 weights.

def _stage_kernel(x_ref, pww_ref, pwb_ref, dww_ref, dwb_ref,
                  o_ref, sum_ref, ssq_ref, pad_ref, *, alpha2):
    n = pl.program_id(0)
    _, H, W, Cin = x_ref.shape
    Cout = o_ref.shape[3]

    @pl.when(n == 0)
    def _init():
        pad_ref[...] = jnp.zeros_like(pad_ref)     # halo stays zero afterwards
        sum_ref[...] = jnp.zeros_like(sum_ref)
        ssq_ref[...] = jnp.zeros_like(ssq_ref)

    # 1x1 (pointwise) conv + bias + ELU(alpha=1), on the MXU.
    x2 = x_ref[0].reshape(H * W, Cin)
    y = jnp.dot(x2, pww_ref[...], preferred_element_type=jnp.float32)
    y = _elu(y + pwb_ref[...], 1.0)

    # Stage the pointwise result in the zero-padded VMEM scratch (pad = 1).
    pad_ref[1:H + 1, 1:W + 1, :] = y.reshape(H, W, Cout)

    # Depthwise 3x3 (stride 1, pad 1, dil 1): 9-tap MAC from shifted VMEM views.
    w9 = dww_ref[...]                                # (9, Cout), loaded once
    acc = pad_ref[0:H, 0:W, :] * w9[0]
    t = 1
    for kh in range(3):
        for kw in range(3):
            if kh == 0 and kw == 0:
                continue
            acc = acc + pad_ref[kh:kh + H, kw:kw + W, :] * w9[t]
            t += 1
    z = acc + dwb_ref[...]
    if alpha2 is not None:
        z = _elu(z, alpha2)
    o_ref[0] = z.astype(o_ref.dtype)

    # Per-channel BN statistics of this stage's output (for the next stage).
    z2 = z.reshape(H * W, Cout)
    sum_ref[...] += jnp.sum(z2, axis=0, keepdims=True)
    ssq_ref[...] += jnp.sum(z2 * z2, axis=0, keepdims=True)


def _stage(x_nhwc, pw_w, pw_b, dw_w33c, dw_b, alpha2):
    """Fused 1x1 conv + ELU(1) + depthwise 3x3 (s=1,p=1,d=1) + bias + optional ELU.

    Returns (y, channel_sum, channel_sumsq) where the statistics are over the
    stage output (used to fold the following BatchNorm)."""
    N, H, W, Cin = x_nhwc.shape
    Cout = pw_w.shape[1]
    dw9 = dw_w33c.reshape(9, Cout)                   # (kh*3+kw, C)

    y, s, ss = pl.pallas_call(
        functools.partial(_stage_kernel, alpha2=alpha2),
        grid=(N,),
        in_specs=[
            pl.BlockSpec((1, H, W, Cin), lambda n: (n, 0, 0, 0)),
            pl.BlockSpec((Cin, Cout), lambda n: (0, 0)),
            pl.BlockSpec((1, Cout), lambda n: (0, 0)),
            pl.BlockSpec((9, Cout), lambda n: (0, 0)),
            pl.BlockSpec((1, Cout), lambda n: (0, 0)),
        ],
        out_specs=(
            pl.BlockSpec((1, H, W, Cout), lambda n: (n, 0, 0, 0)),
            pl.BlockSpec((1, Cout), lambda n: (0, 0)),   # sum   (accumulator)
            pl.BlockSpec((1, Cout), lambda n: (0, 0)),   # sumsq (accumulator)
        ),
        out_shape=(
            jax.ShapeDtypeStruct((N, H, W, Cout), jnp.float32),
            jax.ShapeDtypeStruct((1, Cout), jnp.float32),
            jax.ShapeDtypeStruct((1, Cout), jnp.float32),
        ),
        scratch_shapes=[pltpu.VMEM((H + 2, W + 2, Cout), jnp.float32)],
        compiler_params=pltpu.CompilerParams(
            dimension_semantics=("arbitrary",)),     # batch axis carries accumulators
    )(x_nhwc, pw_w, pw_b.reshape(1, Cout), dw9, dw_b.reshape(1, Cout))
    return y, s, ss


def _fold_bn(ch_sum, ch_ssq, count, gamma, beta, pw_w, pw_b, eps=1e-5):
    """Fold train-mode BatchNorm (batch stats) into the following 1x1 conv."""
    mean = ch_sum[0] / count
    var = jnp.maximum(ch_ssq[0] / count - mean * mean, 0.0)
    inv = jax.lax.rsqrt(var + eps)
    scale = gamma * inv                      # per input-channel
    shift = beta - mean * scale
    w_f = scale[:, None] * pw_w              # (Cin, Cout)
    b_f = pw_b + shift @ pw_w                # (Cout,)
    return w_f, b_f


# ---------------- parameters & forward ----------------

def init_params(key, in_ch, out_ch):
    ks = jax.random.split(key, 12)
    nrm = lambda k, s, sc: sc * jax.random.normal(k, s, jnp.float32)
    return {
        # SeparableConv2d(in_ch, in_ch, 3, stride=2, padding=2, dilation=2)
        'pw0_w': nrm(ks[0], (in_ch, in_ch), 0.3), 'pw0_b': nrm(ks[1], (in_ch,), 0.1),
        'dw0_w': nrm(ks[2], (3, 3, in_ch), 0.3), 'dw0_b': nrm(ks[3], (in_ch,), 0.1),
        # double_conv(in_ch, out_ch)
        'bn1_g': jnp.ones((in_ch,), jnp.float32), 'bn1_b': jnp.zeros((in_ch,), jnp.float32),
        'pw1_w': nrm(ks[4], (in_ch, out_ch), 0.3), 'pw1_b': nrm(ks[5], (out_ch,), 0.1),
        'dw1_w': nrm(ks[6], (3, 3, out_ch), 0.3), 'dw1_b': nrm(ks[7], (out_ch,), 0.1),
        'bn2_g': jnp.ones((out_ch,), jnp.float32), 'bn2_b': jnp.zeros((out_ch,), jnp.float32),
        'pw2_w': nrm(ks[8], (out_ch, out_ch), 0.3), 'pw2_b': nrm(ks[9], (out_ch,), 0.1),
        'dw2_w': nrm(ks[10], (3, 3, out_ch), 0.3), 'dw2_b': nrm(ks[11], (out_ch,), 0.1),
    }


def down_forward(x_nchw, p):
    x = x_nchw.astype(jnp.float32)

    # Stage 1: SeparableConv2d(in, in, 3, s=2, p=2, d=2).
    # The strided dilated depthwise only reads even rows/cols of its input, and
    # the preceding conv is 1x1, so: subsample first, then run the shared
    # stride-1/pad-1 fused kernel.  (Also converts NCHW -> NHWC once.)
    xe = jnp.transpose(x[:, :, ::2, ::2], (0, 2, 3, 1))
    y1, s1, q1 = _stage(xe, p['pw0_w'], p['pw0_b'], p['dw0_w'], p['dw0_b'], alpha2=None)

    # Stage 2: BN(in) folded into pw1 -> SeparableConv2d(in,out,3,p=1) -> ELU(0.1)
    cnt1 = y1.shape[0] * y1.shape[1] * y1.shape[2]
    w1, b1 = _fold_bn(s1, q1, cnt1, p['bn1_g'], p['bn1_b'], p['pw1_w'], p['pw1_b'])
    y2, s2, q2 = _stage(y1, w1, b1, p['dw1_w'], p['dw1_b'], alpha2=0.1)

    # Stage 3: BN(out) folded into pw2 -> SeparableConv2d(out,out,3,p=1) -> ELU(0.1)
    cnt2 = y2.shape[0] * y2.shape[1] * y2.shape[2]
    w2, b2 = _fold_bn(s2, q2, cnt2, p['bn2_g'], p['bn2_b'], p['pw2_w'], p['pw2_b'])
    y3, _, _ = _stage(y2, w2, b2, p['dw2_w'], p['dw2_b'], alpha2=0.1)

    return jnp.transpose(y3, (0, 3, 1, 2))            # NHWC -> NCHW


# ---------------- pure-JAX reference (for correctness check) ----------------

def _ref_forward(x_nchw, p):
    def elu(x, a):
        return jnp.where(x > 0, x, a * (jnp.exp(jnp.minimum(x, 0.0)) - 1.0))

    def pw(x, w, b):
        return jnp.einsum('nchw,co->nohw', x, w) + b[None, :, None, None]

    def dw(x, w33c, b, s, pad, d):
        C = x.shape[1]
        w = jnp.transpose(w33c, (2, 0, 1))[:, None, :, :]            # (C,1,3,3)
        y = jax.lax.conv_general_dilated(
            x, w, (s, s), ((pad, pad), (pad, pad)), rhs_dilation=(d, d),
            feature_group_count=C, dimension_numbers=('NCHW', 'OIHW', 'NCHW'))
        return y + b[None, :, None, None]

    def bn(x, g, be, eps=1e-5):
        m = jnp.mean(x, axis=(0, 2, 3), keepdims=True)
        v = jnp.mean((x - m) ** 2, axis=(0, 2, 3), keepdims=True)
        return (x - m) * jax.lax.rsqrt(v + eps) * g[None, :, None, None] + be[None, :, None, None]

    x = x_nchw.astype(jnp.float32)
    y = elu(pw(x, p['pw0_w'], p['pw0_b']), 1.0)
    y = dw(y, p['dw0_w'], p['dw0_b'], 2, 2, 2)
    y = bn(y, p['bn1_g'], p['bn1_b'])
    y = elu(pw(y, p['pw1_w'], p['pw1_b']), 1.0)
    y = elu(dw(y, p['dw1_w'], p['dw1_b'], 1, 1, 1), 0.1)
    y = bn(y, p['bn2_g'], p['bn2_b'])
    y = elu(pw(y, p['pw2_w'], p['pw2_b']), 1.0)
    y = elu(dw(y, p['dw2_w'], p['dw2_b'], 1, 1, 1), 0.1)
    return y


if __name__ == "__main__":
    key = jax.random.PRNGKey(0)
    kx, kp = jax.random.split(key)
    in_ch, out_ch = 4, 8
    x = jax.random.normal(kx, (2, in_ch, 16, 16), jnp.float32)        # NCHW like PyTorch
    params = init_params(kp, in_ch, out_ch)

    out = jax.block_until_ready(down_forward(x, params))
    assert out.shape == (2, out_ch, 8, 8), out.shape

    ref = _ref_forward(x, params)
    err = float(jnp.max(jnp.abs(out - ref)))
    assert jnp.allclose(out, ref, atol=2e-4, rtol=2e-4), f"max abs err {err}"

    print("KERNEL_OK")
</pallas_src>

<mosaic_0001>
module attributes {stable_mosaic.version = 11 : i64} {
  func.func @_stage_kernel(%arg0: i32, %arg1: memref<1x8x8x4xf32, #tpu.memory_space<vmem>>, %arg2: memref<4x4xf32, #tpu.memory_space<vmem>>, %arg3: memref<1x4xf32, #tpu.memory_space<vmem>>, %arg4: memref<9x4xf32, #tpu.memory_space<vmem>>, %arg5: memref<1x4xf32, #tpu.memory_space<vmem>>, %arg6: memref<1x8x8x4xf32, #tpu.memory_space<vmem>>, %arg7: memref<1x4xf32, #tpu.memory_space<vmem>>, %arg8: memref<1x4xf32, #tpu.memory_space<vmem>>, %arg9: memref<10x10x4xf32, #tpu.memory_space<vmem>>) attributes {dimension_semantics = [#tpu.dimension_semantics<arbitrary>], iteration_bounds = array<i64: 2>, scalar_prefetch = 0 : i64, scratch_operands = 1 : i64, tpu.core_type = #tpu.core_type<tc>, window_params = [{transform_indices = @transform_0, window_bounds = array<i64: 1, 8, 8, 4>}, {pipeline_mode = #tpu.pipeline_mode<synchronous>, transform_indices = @transform_1, window_bounds = array<i64: 4, 4>}, {pipeline_mode = #tpu.pipeline_mode<synchronous>, transform_indices = @transform_2, window_bounds = array<i64: 1, 4>}, {pipeline_mode = #tpu.pipeline_mode<synchronous>, transform_indices = @transform_3, window_bounds = array<i64: 9, 4>}, {pipeline_mode = #tpu.pipeline_mode<synchronous>, transform_indices = @transform_4, window_bounds = array<i64: 1, 4>}, {transform_indices = @transform_5, window_bounds = array<i64: 1, 8, 8, 4>}, {pipeline_mode = #tpu.pipeline_mode<synchronous>, transform_indices = @transform_6, window_bounds = array<i64: 1, 4>}, {pipeline_mode = #tpu.pipeline_mode<synchronous>, transform_indices = @transform_7, window_bounds = array<i64: 1, 4>}]} {
    %c0_i32 = arith.constant 0 : i32
    %0 = arith.cmpi eq, %arg0, %c0_i32 : i32
    %1 = arith.extui %0 : i1 to i32
    %c0_i32_0 = arith.constant 0 : i32
    %2 = arith.cmpi ne, %1, %c0_i32_0 : i32
    scf.if %2 {
      %cst_58 = arith.constant 0.000000e+00 : f32
      %105 = vector.broadcast %cst_58 : f32 to vector<10x10x4xf32>
      %c0_59 = arith.constant 0 : index
      %c0_60 = arith.constant 0 : index
      %c0_61 = arith.constant 0 : index
      %106 = vector.load %arg9[%c0_59, %c0_60, %c0_61] : memref<10x10x4xf32, #tpu.memory_space<vmem>>, vector<10x10x4xf32>
      tpu.vector_store %arg9[%c0_59, %c0_60, %c0_61], %105 {strides = array<i32>} : memref<10x10x4xf32, #tpu.memory_space<vmem>>, vector<10x10x4xf32>,
      %cst_62 = arith.constant 0.000000e+00 : f32
      %107 = vector.broadcast %cst_62 : f32 to vector<1x4xf32>
      %c0_63 = arith.constant 0 : index
      %c0_64 = arith.constant 0 : index
      %108 = vector.load %arg7[%c0_63, %c0_64] : memref<1x4xf32, #tpu.memory_space<vmem>>, vector<1x4xf32>
      tpu.vector_store %arg7[%c0_63, %c0_64], %107 {strides = array<i32>} : memref<1x4xf32, #tpu.memory_space<vmem>>, vector<1x4xf32>,
      %cst_65 = arith.constant 0.000000e+00 : f32
      %109 = vector.broadcast %cst_65 : f32 to vector<1x4xf32>
      %c0_66 = arith.constant 0 : index
      %c0_67 = arith.constant 0 : index
      %110 = vector.load %arg8[%c0_66, %c0_67] : memref<1x4xf32, #tpu.memory_space<vmem>>, vector<1x4xf32>
      tpu.vector_store %arg8[%c0_66, %c0_67], %109 {strides = array<i32>} : memref<1x4xf32, #tpu.memory_space<vmem>>, vector<1x4xf32>,
    } else {
    }
    %c0 = arith.constant 0 : index
    %c0_1 = arith.constant 0 : index
    %c0_2 = arith.constant 0 : index
    %c0_3 = arith.constant 0 : index
    %3 = vector.load %arg1[%c0, %c0_1, %c0_2, %c0_3] : memref<1x8x8x4xf32, #tpu.memory_space<vmem>>, vector<1x8x8x4xf32>
    %4 = vector.shape_cast %3 : vector<1x8x8x4xf32> to vector<8x8x4xf32>
    %5 = vector.shape_cast %4 : vector<8x8x4xf32> to vector<64x4xf32>
    %c0_4 = arith.constant 0 : index
    %c0_5 = arith.constant 0 : index
    %6 = vector.load %arg2[%c0_4, %c0_5] : memref<4x4xf32, #tpu.memory_space<vmem>>, vector<4x4xf32>
    %cst = arith.constant dense<0.000000e+00> : vector<64x4xf32>
    %7 = tpu.matmul %5, %6, %cst {dimension_numbers = #tpu.dot_dimension_numbers<[1], [0], [0], [1], [0, 0, 1, 1], [], []>} : vector<64x4xf32>, vector<4x4xf32>, vector<64x4xf32> -> vector<64x4xf32>
    %c0_6 = arith.constant 0 : index
    %c0_7 = arith.constant 0 : index
    %8 = vector.load %arg3[%c0_6, %c0_7] : memref<1x4xf32, #tpu.memory_space<vmem>>, vector<1x4xf32>
    %9 = vector.broadcast %8 : vector<1x4xf32> to vector<64x4xf32>
    %10 = arith.addf %7, %9 : vector<64x4xf32>
    %cst_8 = arith.constant 0.000000e+00 : f32
    %11 = vector.broadcast %cst_8 : f32 to vector<64x4xf32>
    %12 = arith.cmpf ogt, %10, %11 : vector<64x4xf32>
    %cst_9 = arith.constant 0.000000e+00 : f32
    %13 = vector.broadcast %cst_9 : f32 to vector<64x4xf32>
    %14 = arith.minimumf %10, %13 : vector<64x4xf32>
    %15 = math.exp %14 : vector<64x4xf32>
    %cst_10 = arith.constant 1.000000e+00 : f32
    %16 = vector.broadcast %cst_10 : f32 to vector<64x4xf32>
    %17 = arith.subf %15, %16 : vector<64x4xf32>
    %cst_11 = arith.constant 1.000000e+00 : f32
    %18 = vector.broadcast %cst_11 : f32 to vector<64x4xf32>
    %19 = arith.mulf %18, %17 : vector<64x4xf32>
    %20 = arith.select %12, %10, %19 : vector<64x4xi1>, vector<64x4xf32>
    %21 = vector.shape_cast %20 : vector<64x4xf32> to vector<8x8x4xf32>
    %c1 = arith.constant 1 : index
    %c1_12 = arith.constant 1 : index
    %c0_13 = arith.constant 0 : index
    %22 = vector.load %arg9[%c1, %c1_12, %c0_13] : memref<10x10x4xf32, #tpu.memory_space<vmem>>, vector<8x8x4xf32>
    tpu.vector_store %arg9[%c1, %c1_12, %c0_13], %21 {strides = array<i32>} : memref<10x10x4xf32, #tpu.memory_space<vmem>>, vector<8x8x4xf32>,
    %c0_14 = arith.constant 0 : index
    %c0_15 = arith.constant 0 : index
    %23 = vector.load %arg4[%c0_14, %c0_15] : memref<9x4xf32, #tpu.memory_space<vmem>>, vector<9x4xf32>
    %c0_16 = arith.constant 0 : index
    %c0_17 = arith.constant 0 : index
    %c0_18 = arith.constant 0 : index
    %24 = vector.load %arg9[%c0_16, %c0_17, %c0_18] : memref<10x10x4xf32, #tpu.memory_space<vmem>>, vector<8x8x4xf32>
    %25 = vector.extract_strided_slice %23 {offsets = [0, 0], sizes = [1, 4], strides = [1, 1]} : vector<9x4xf32> to vector<1x4xf32>
    %26 = vector.shape_cast %25 : vector<1x4xf32> to vector<4xf32>
    %27 = vector.shape_cast %26 : vector<4xf32> to vector<1x1x4xf32>
    %28 = vector.broadcast %27 : vector<1x1x4xf32> to vector<8x8x4xf32>
    %29 = arith.mulf %24, %28 : vector<8x8x4xf32>
    %c0_19 = arith.constant 0 : index
    %c1_20 = arith.constant 1 : index
    %c0_21 = arith.constant 0 : index
    %30 = vector.load %arg9[%c0_19, %c1_20, %c0_21] : memref<10x10x4xf32, #tpu.memory_space<vmem>>, vector<8x8x4xf32>
    %31 = vector.extract_strided_slice %23 {offsets = [1, 0], sizes = [1, 4], strides = [1, 1]} : vector<9x4xf32> to vector<1x4xf32>
    %32 = vector.shape_cast %31 : vector<1x4xf32> to vector<4xf32>
    %33 = vector.shape_cast %32 : vector<4xf32> to vector<1x1x4xf32>
    %34 = vector.broadcast %33 : vector<1x1x4xf32> to vector<8x8x4xf32>
    %35 = arith.mulf %30, %34 : vector<8x8x4xf32>
    %36 = arith.addf %29, %35 : vector<8x8x4xf32>
    %c0_22 = arith.constant 0 : index
    %c2 = arith.constant 2 : index
    %c0_23 = arith.constant 0 : index
    %37 = vector.load %arg9[%c0_22, %c2, %c0_23] : memref<10x10x4xf32, #tpu.memory_space<vmem>>, vector<8x8x4xf32>
    %38 = vector.extract_strided_slice %23 {offsets = [2, 0], sizes = [1, 4], strides = [1, 1]} : vector<9x4xf32> to vector<1x4xf32>
    %39 = vector.shape_cast %38 : vector<1x4xf32> to vector<4xf32>
    %40 = vector.shape_cast %39 : vector<4xf32> to vector<1x1x4xf32>
    %41 = vector.broadcast %40 : vector<1x1x4xf32> to vector<8x8x4xf32>
    %42 = arith.mulf %37, %41 : vector<8x8x4xf32>
    %43 = arith.addf %36, %42 : vector<8x8x4xf32>
    %c1_24 = arith.constant 1 : index
    %c0_25 = arith.constant 0 : index
    %c0_26 = arith.constant 0 : index
    %44 = vector.load %arg9[%c1_24, %c0_25, %c0_26] : memref<10x10x4xf32, #tpu.memory_space<vmem>>, vector<8x8x4xf32>
    %45 = vector.extract_strided_slice %23 {offsets = [3, 0], sizes = [1, 4], strides = [1, 1]} : vector<9x4xf32> to vector<1x4xf32>
    %46 = vector.shape_cast %45 : vector<1x4xf32> to vector<4xf32>
    %47 = vector.shape_cast %46 : vector<4xf32> to vector<1x1x4xf32>
    %48 = vector.broadcast %47 : vector<1x1x4xf32> to vector<8x8x4xf32>
    %49 = arith.mulf %44, %48 : vector<8x8x4xf32>
    %50 = arith.addf %43, %49 : vector<8x8x4xf32>
    %c1_27 = arith.constant 1 : index
    %c1_28 = arith.constant 1 : index
    %c0_29 = arith.constant 0 : index
    %51 = vector.load %arg9[%c1_27, %c1_28, %c0_29] : memref<10x10x4xf32, #tpu.memory_space<vmem>>, vector<8x8x4xf32>
    %52 = vector.extract_strided_slice %23 {offsets = [4, 0], sizes = [1, 4], strides = [1, 1]} : vector<9x4xf32> to vector<1x4xf32>
    %53 = vector.shape_cast %52 : vector<1x4xf32> to vector<4xf32>
    %54 = vector.shape_cast %53 : vector<4xf32> to vector<1x1x4xf32>
    %55 = vector.broadcast %54 : vector<1x1x4xf32> to vector<8x8x4xf32>
    %56 = arith.mulf %51, %55 : vector<8x8x4xf32>
    %57 = arith.addf %50, %56 : vector<8x8x4xf32>
    %c1_30 = arith.constant 1 : index
    %c2_31 = arith.constant 2 : index
    %c0_32 = arith.constant 0 : index
    %58 = vector.load %arg9[%c1_30, %c2_31, %c0_32] : memref<10x10x4xf32, #tpu.memory_space<vmem>>, vector<8x8x4xf32>
    %59 = vector.extract_strided_slice %23 {offsets = [5, 0], sizes = [1, 4], strides = [1, 1]} : vector<9x4xf32> to vector<1x4xf32>
    %60 = vector.shape_cast %59 : vector<1x4xf32> to vector<4xf32>
    %61 = vector.shape_cast %60 : vector<4xf32> to vector<1x1x4xf32>
    %62 = vector.broadcast %61 : vector<1x1x4xf32> to vector<8x8x4xf32>
    %63 = arith.mulf %58, %62 : vector<8x8x4xf32>
    %64 = arith.addf %57, %63 : vector<8x8x4xf32>
    %c2_33 = arith.constant 2 : index
    %c0_34 = arith.constant 0 : index
    %c0_35 = arith.constant 0 : index
    %65 = vector.load %arg9[%c2_33, %c0_34, %c0_35] : memref<10x10x4xf32, #tpu.memory_space<vmem>>, vector<8x8x4xf32>
    %66 = vector.extract_strided_slice %23 {offsets = [6, 0], sizes = [1, 4], strides = [1, 1]} : vector<9x4xf32> to vector<1x4xf32>
    %67 = vector.shape_cast %66 : vector<1x4xf32> to vector<4xf32>
    %68 = vector.shape_cast %67 : vector<4xf32> to vector<1x1x4xf32>
    %69 = vector.broadcast %68 : vector<1x1x4xf32> to vector<8x8x4xf32>
    %70 = arith.mulf %65, %69 : vector<8x8x4xf32>
    %71 = arith.addf %64, %70 : vector<8x8x4xf32>
    %c2_36 = arith.constant 2 : index
    %c1_37 = arith.constant 1 : index
    %c0_38 = arith.constant 0 : index
    %72 = vector.load %arg9[%c2_36, %c1_37, %c0_38] : memref<10x10x4xf32, #tpu.memory_space<vmem>>, vector<8x8x4xf32>
    %73 = vector.extract_strided_slice %23 {offsets = [7, 0], sizes = [1, 4], strides = [1, 1]} : vector<9x4xf32> to vector<1x4xf32>
    %74 = vector.shape_cast %73 : vector<1x4xf32> to vector<4xf32>
    %75 = vector.shape_cast %74 : vector<4xf32> to vector<1x1x4xf32>
    %76 = vector.broadcast %75 : vector<1x1x4xf32> to vector<8x8x4xf32>
    %77 = arith.mulf %72, %76 : vector<8x8x4xf32>
    %78 = arith.addf %71, %77 : vector<8x8x4xf32>
    %c2_39 = arith.constant 2 : index
    %c2_40 = arith.constant 2 : index
    %c0_41 = arith.constant 0 : index
    %79 = vector.load %arg9[%c2_39, %c2_40, %c0_41] : memref<10x10x4xf32, #tpu.memory_space<vmem>>, vector<8x8x4xf32>
    %80 = vector.extract_strided_slice %23 {offsets = [8, 0], sizes = [1, 4], strides = [1, 1]} : vector<9x4xf32> to vector<1x4xf32>
    %81 = vector.shape_cast %80 : vector<1x4xf32> to vector<4xf32>
    %82 = vector.shape_cast %81 : vector<4xf32> to vector<1x1x4xf32>
    %83 = vector.broadcast %82 : vector<1x1x4xf32> to vector<8x8x4xf32>
    %84 = arith.mulf %79, %83 : vector<8x8x4xf32>
    %85 = arith.addf %78, %84 : vector<8x8x4xf32>
    %c0_42 = arith.constant 0 : index
    %c0_43 = arith.constant 0 : index
    %86 = vector.load %arg5[%c0_42, %c0_43] : memref<1x4xf32, #tpu.memory_space<vmem>>, vector<1x4xf32>
    %87 = vector.shape_cast %86 : vector<1x4xf32> to vector<1x1x4xf32>
    %88 = vector.broadcast %87 : vector<1x1x4xf32> to vector<8x8x4xf32>
    %89 = arith.addf %85, %88 : vector<8x8x4xf32>
    %c0_44 = arith.constant 0 : index
    %c0_45 = arith.constant 0 : index
    %c0_46 = arith.constant 0 : index
    %c0_47 = arith.constant 0 : index
    %90 = vector.load %arg6[%c0_44, %c0_45, %c0_46, %c0_47] : memref<1x8x8x4xf32, #tpu.memory_space<vmem>>, vector<1x8x8x4xf32>
    %91 = vector.shape_cast %90 : vector<1x8x8x4xf32> to vector<8x8x4xf32>
    %92 = vector.shape_cast %89 : vector<8x8x4xf32> to vector<1x8x8x4xf32>
    tpu.vector_store %arg6[%c0_44, %c0_45, %c0_46, %c0_47], %92 {strides = array<i32>} : memref<1x8x8x4xf32, #tpu.memory_space<vmem>>, vector<1x8x8x4xf32>,
    %93 = vector.shape_cast %89 : vector<8x8x4xf32> to vector<64x4xf32>
    %c0_48 = arith.constant 0 : index
    %c0_49 = arith.constant 0 : index
    %94 = vector.load %arg7[%c0_48, %c0_49] : memref<1x4xf32, #tpu.memory_space<vmem>>, vector<1x4xf32>
    %cst_50 = arith.constant dense<0.000000e+00> : vector<4xf32>
    %95 = vector.multi_reduction <add>, %93, %cst_50 [0] : vector<64x4xf32> to vector<4xf32>
    %96 = vector.shape_cast %95 : vector<4xf32> to vector<1x4xf32>
    %97 = arith.addf %94, %96 : vector<1x4xf32>
    %c0_51 = arith.constant 0 : index
    %c0_52 = arith.constant 0 : index
    %98 = vector.load %arg7[%c0_51, %c0_52] : memref<1x4xf32, #tpu.memory_space<vmem>>, vector<1x4xf32>
    tpu.vector_store %arg7[%c0_51, %c0_52], %97 {strides = array<i32>} : memref<1x4xf32, #tpu.memory_space<vmem>>, vector<1x4xf32>,
    %c0_53 = arith.constant 0 : index
    %c0_54 = arith.constant 0 : index
    %99 = vector.load %arg8[%c0_53, %c0_54] : memref<1x4xf32, #tpu.memory_space<vmem>>, vector<1x4xf32>
    %100 = arith.mulf %93, %93 : vector<64x4xf32>
    %cst_55 = arith.constant dense<0.000000e+00> : vector<4xf32>
    %101 = vector.multi_reduction <add>, %100, %cst_55 [0] : vector<64x4xf32> to vector<4xf32>
    %102 = vector.shape_cast %101 : vector<4xf32> to vector<1x4xf32>
    %103 = arith.addf %99, %102 : vector<1x4xf32>
    %c0_56 = arith.constant 0 : index
    %c0_57 = arith.constant 0 : index
    %104 = vector.load %arg8[%c0_56, %c0_57] : memref<1x4xf32, #tpu.memory_space<vmem>>, vector<1x4xf32>
    tpu.vector_store %arg8[%c0_56, %c0_57], %103 {strides = array<i32>} : memref<1x4xf32, #tpu.memory_space<vmem>>, vector<1x4xf32>,
    return
  }
  func.func @transform_0(%arg0: i32) -> (i32, i32, i32, i32) {
    %c0_i32 = arith.constant 0 : i32
    %c0_i32_0 = arith.constant 0 : i32
    %c0_i32_1 = arith.constant 0 : i32
    %c0_i32_2 = arith.constant 0 : i32
    return %arg0, %c0_i32, %c0_i32_0, %c0_i32_1 : i32, i32, i32, i32
  }
  func.func @transform_1(%arg0: i32) -> (i32, i32) {
    %c0_i32 = arith.constant 0 : i32
    %c0_i32_0 = arith.constant 0 : i32
    %c0_i32_1 = arith.constant 0 : i32
    return %c0_i32, %c0_i32_0 : i32, i32
  }
  func.func @transform_2(%arg0: i32) -> (i32, i32) {
    %c0_i32 = arith.constant 0 : i32
    %c0_i32_0 = arith.constant 0 : i32
    %c0_i32_1 = arith.constant 0 : i32
    return %c0_i32, %c0_i32_0 : i32, i32
  }
  func.func @transform_3(%arg0: i32) -> (i32, i32) {
    %c0_i32 = arith.constant 0 : i32
    %c0_i32_0 = arith.constant 0 : i32
    %c0_i32_1 = arith.constant 0 : i32
    return %c0_i32, %c0_i32_0 : i32, i32
  }
  func.func @transform_4(%arg0: i32) -> (i32, i32) {
    %c0_i32 = arith.constant 0 : i32
    %c0_i32_0 = arith.constant 0 : i32
    %c0_i32_1 = arith.constant 0 : i32
    return %c0_i32, %c0_i32_0 : i32, i32
  }
  func.func @transform_5(%arg0: i32) -> (i32, i32, i32, i32) {
    %c0_i32 = arith.constant 0 : i32
    %c0_i32_0 = arith.constant 0 : i32
    %c0_i32_1 = arith.constant 0 : i32
    %c0_i32_2 = arith.constant 0 : i32
    return %arg0, %c0_i32, %c0_i32_0, %c0_i32_1 : i32, i32, i32, i32
  }
  func.func @transform_6(%arg0: i32) -> (i32, i32) {
    %c0_i32 = arith.constant 0 : i32
    %c0_i32_0 = arith.constant 0 : i32
    %c0_i32_1 = arith.constant 0 : i32
    return %c0_i32, %c0_i32_0 : i32, i32
  }
  func.func @transform_7(%arg0: i32) -> (i32, i32) {
    %c0_i32 = arith.constant 0 : i32
    %c0_i32_0 = arith.constant 0 : i32
    %c0_i32_1 = arith.constant 0 : i32
    return %c0_i32, %c0_i32_0 : i32, i32
  }
}

</mosaic_0001>

<llo_original>
// kernel: tpu_custom_call.1
$region0: #{tpu_custom_call.1}
  #allocation0 [shape = 'u32[]', space=smem, size = 0x4, offset = 0x4, fixed_abs, tag = 'smem constant byte address 0x4 - core index']
  #allocation1 [shape = 'u32[144,128]{1,0:T(1,128)}', space=vmem, size = 0x12000, scoped, tag = 'internal scratch']
  #allocation2 [shape = 'f32[10,10,4]{2,1,0:T(8,128)}', space=vmem, size = 0x14000, scoped, tag = 'scratch operand']
  %s0 = inlined_call_operand.vmem [shape: f32[2,8,8,4], index: 0, kind: input, shape index: {}]
  %s1 = inlined_call_operand.vmem [shape: f32[4,4], index: 1, kind: input, shape index: {}]
  %s2 = inlined_call_operand.vmem [shape: f32[1,4], index: 2, kind: input, shape index: {}]
  %s3 = inlined_call_operand.vmem [shape: f32[9,4], index: 3, kind: input, shape index: {}]
  %s4 = inlined_call_operand.vmem [shape: f32[1,4], index: 4, kind: input, shape index: {}]
  %s5 = inlined_call_operand.vmem [shape: f32[2,8,8,4], index: 5, kind: output, shape index: {0}]
  %s6 = inlined_call_operand.hbm [shape: f32[1,4], index: 6, kind: output, shape index: {1}]
  %s7 = inlined_call_operand.hbm [shape: f32[1,4], index: 7, kind: output, shape index: {2}]
  %8 = xla_tuple %s5, %s6, %s7
  %s9 = sld [smem:[#allocation0]]
  $region73: #{tpu_custom_call.1} parent=0
    _
  %s11 = ssub.s32 1, %s9
  %s12 = scalar_select 0, %s11, %s9
  $region1: #{tpu_custom_call.1} parent=0
    #allocation3 [shape = 'u8[512]{0}', space=vmem, size = 0x400, scoped, tag = 'output window, operand 1, single buffered']
    #allocation4 [shape = 's32[2]{0}', space=sflag, size = 0x8, scoped, tag = 'scoped memory for tpu_custom_call.1']
    #allocation5 [shape = 'u8[512]{0}', space=vmem, size = 0x400, scoped, tag = 'output window, operand 2, single buffered']
    #allocation6 [shape = 's32[1]{0}', space=sflag, size = 0x4, scoped, tag = 'scoped memory for tpu_custom_call.1']
    %13 = vsyncpa [#allocation4], 0
    %14 = vsyncpa [#allocation6], 0
    loop: start=0, step=1, limit=4
    $region2: #{tpu_custom_call.1} parent=1 // loop_pre_header
      _
    $region3: #{tpu_custom_call.1} parent=1 // loop_header
      %s16 = sphi 0, %s20
      %p17 = scmp.ge.s32.totalorder %s16, 4
      %s26 = sphi 0, %s28
      %s29 = sphi 0, %s26
      %s30 = sphi 0, %s29
      %s46 = sphi 0, %s30
      %s50 = sphi 0, %s50
      %s52 = sphi 0, %s50
      %s53 = sphi 0, %s52
      %s67 = sphi 0, %s53
      %s71 = sphi 0, %s71
      %s73 = sphi 0, %s71
      %s74 = sphi 0, %s73
      %s88 = sphi 0, %s74
      %s92 = sphi 0, %s92
      %s94 = sphi 0, %s92
      %s95 = sphi 0, %s94
      %s109 = sphi 0, %s95
      %s113 = sphi 0, %s113
      %s115 = sphi 0, %s113
      %s116 = sphi 0, %s115
      %s130 = sphi 0, %s116
      %s136 = sphi 0, %s138
      %s139 = sphi 0, %s136
      %s140 = sphi 0, %s139
      %s156 = sphi 0, %s140
      %s160 = sphi 0, %s160
      %s162 = sphi 0, %s160
      %s163 = sphi 0, %s162
      %s177 = sphi 0, %s163
      %s181 = sphi 0, %s181
      %s183 = sphi 0, %s181
      %s184 = sphi 0, %s183
      %s198 = sphi 0, %s184
    $region4: #{tpu_custom_call.1} parent=1 // loop_header_branch
      %19 = sbr.rel (%p17) target = $region8
    $region5: #{tpu_custom_call.1} parent=1 // loop_body
      %s21 = ssub.s32 %s16, 1
      %s22 = ssub.s32 %s16, 2
      %s23 = sadd.s32 %s16, 1
      %s24 = ssub.s32 %s16, %s23
      %p25 = scmp.eq.s32.totalorder %s24, 0
      %s27 = sadd.s32 %s26, 1
      %s28 = scalar_select %p25, %s26, %s27
      %p31 = pneg %p25
      %p32 = scmp.eq.s32.totalorder %s16, 1
      %p33 = por %p31, %p32
      %p34 = scmp.ne.s32.totalorder %s26, %s29
      %p35 = scmp.eq.s32.totalorder %s16, 0
      %p36 = por %p34, %p35
      %p37 = scmp.ne.s32.totalorder %s26, %s29
      %p38 = scmp.eq.s32.totalorder %s21, 1
      %p39 = por %p37, %p38
      %p40 = scmp.ne.s32.totalorder %s29, %s30
      %p41 = scmp.eq.s32.totalorder %s21, 0
      %p42 = por %p40, %p41
      %p43 = scmp.ne.s32.totalorder %s29, %s30
      %p44 = scmp.eq.s32.totalorder %s22, 1
      %p45 = por %p43, %p44
      %p47 = scmp.ne.s32.totalorder %s30, %s46
      %p48 = scmp.eq.s32.totalorder %s22, 0
      %p49 = por %p47, %p48
      %s51 = sadd.s32 %s50, 1
      %p54 = scmp.eq.s32.totalorder %s16, 1
      %p55 = scmp.ne.s32.totalorder %s50, %s52
      %p56 = scmp.eq.s32.totalorder %s16, 0
      %p57 = por %p55, %p56
      %p58 = scmp.ne.s32.totalorder %s50, %s52
      %p59 = scmp.eq.s32.totalorder %s21, 1
      %p60 = por %p58, %p59
      %p61 = scmp.ne.s32.totalorder %s52, %s53
      %p62 = scmp.eq.s32.totalorder %s21, 0
      %p63 = por %p61, %p62
      %p64 = scmp.ne.s32.totalorder %s52, %s53
      %p65 = scmp.eq.s32.totalorder %s22, 1
      %p66 = por %p64, %p65
      %p68 = scmp.ne.s32.totalorder %s53, %s67
      %p69 = scmp.eq.s32.totalorder %s22, 0
      %p70 = por %p68, %p69
      %s72 = sadd.s32 %s71, 1
      %p75 = scmp.eq.s32.totalorder %s16, 1
      %p76 = scmp.ne.s32.totalorder %s71, %s73
      %p77 = scmp.eq.s32.totalorder %s16, 0
      %p78 = por %p76, %p77
      %p79 = scmp.ne.s32.totalorder %s71, %s73
      %p80 = scmp.eq.s32.totalorder %s21, 1
      %p81 = por %p79, %p80
      %p82 = scmp.ne.s32.totalorder %s73, %s74
      %p83 = scmp.eq.s32.totalorder %s21, 0
      %p84 = por %p82, %p83
      %p85 = scmp.ne.s32.totalorder %s73, %s74
      %p86 = scmp.eq.s32.totalorder %s22, 1
      %p87 = por %p85, %p86
      %p89 = scmp.ne.s32.totalorder %s74, %s88
      %p90 = scmp.eq.s32.totalorder %s22, 0
      %p91 = por %p89, %p90
      %s93 = sadd.s32 %s92, 1
      %p96 = scmp.eq.s32.totalorder %s16, 1
      %p97 = scmp.ne.s32.totalorder %s92, %s94
      %p98 = scmp.eq.s32.totalorder %s16, 0
      %p99 = por %p97, %p98
      %p100 = scmp.ne.s32.totalorder %s92, %s94
      %p101 = scmp.eq.s32.totalorder %s21, 1
      %p102 = por %p100, %p101
      %p103 = scmp.ne.s32.totalorder %s94, %s95
      %p104 = scmp.eq.s32.totalorder %s21, 0
      %p105 = por %p103, %p104
      %p106 = scmp.ne.s32.totalorder %s94, %s95
      %p107 = scmp.eq.s32.totalorder %s22, 1
      %p108 = por %p106, %p107
      %p110 = scmp.ne.s32.totalorder %s95, %s109
      %p111 = scmp.eq.s32.totalorder %s22, 0
      %p112 = por %p110, %p111
      %s114 = sadd.s32 %s113, 1
      %p117 = scmp.eq.s32.totalorder %s16, 1
      %p118 = scmp.ne.s32.totalorder %s113, %s115
      %p119 = scmp.eq.s32.totalorder %s16, 0
      %p120 = por %p118, %p119
      %p121 = scmp.ne.s32.totalorder %s113, %s115
      %p122 = scmp.eq.s32.totalorder %s21, 1
      %p123 = por %p121, %p122
      %p124 = scmp.ne.s32.totalorder %s115, %s116
      %p125 = scmp.eq.s32.totalorder %s21, 0
      %p126 = por %p124, %p125
      %p127 = scmp.ne.s32.totalorder %s115, %s116
      %p128 = scmp.eq.s32.totalorder %s22, 1
      %p129 = por %p127, %p128
      %p131 = scmp.ne.s32.totalorder %s116, %s130
      %p132 = scmp.eq.s32.totalorder %s22, 0
      %p133 = por %p131, %p132
      %s134 = ssub.s32 %s16, %s23
      %p135 = scmp.eq.s32.totalorder %s134, 0
      %s137 = sadd.s32 %s136, 1
      %s138 = scalar_select %p135, %s136, %s137
      %p141 = pneg %p135
      %p142 = scmp.eq.s32.totalorder %s16, 1
      %p143 = por %p141, %p142
      %p144 = scmp.ne.s32.totalorder %s136, %s139
      %p145 = scmp.eq.s32.totalorder %s16, 0
      %p146 = por %p144, %p145
      %p147 = scmp.ne.s32.totalorder %s136, %s139
      %p148 = scmp.eq.s32.totalorder %s21, 1
      %p149 = por %p147, %p148
      %p150 = scmp.ne.s32.totalorder %s139, %s140
      %p151 = scmp.eq.s32.totalorder %s21, 0
      %p152 = por %p150, %p151
      %p153 = scmp.ne.s32.totalorder %s139, %s140
      %p154 = scmp.eq.s32.totalorder %s22, 1
      %p155 = por %p153, %p154
      %p157 = scmp.ne.s32.totalorder %s140, %s156
      %p158 = scmp.eq.s32.totalorder %s22, 0
      %p159 = por %p157, %p158
      %s161 = sadd.s32 %s160, 1
      %p164 = scmp.eq.s32.totalorder %s16, 1
      %p165 = scmp.ne.s32.totalorder %s160, %s162
      %p166 = scmp.eq.s32.totalorder %s16, 0
      %p167 = por %p165, %p166
      %p168 = scmp.ne.s32.totalorder %s160, %s162
      %p169 = scmp.eq.s32.totalorder %s21, 1
      %p170 = por %p168, %p169
      %p171 = scmp.ne.s32.totalorder %s162, %s163
      %p172 = scmp.eq.s32.totalorder %s21, 0
      %p173 = por %p171, %p172
      %p174 = scmp.ne.s32.totalorder %s162, %s163
      %p175 = scmp.eq.s32.totalorder %s22, 1
      %p176 = por %p174, %p175
      %p178 = scmp.ne.s32.totalorder %s163, %s177
      %p179 = scmp.eq.s32.totalorder %s22, 0
      %p180 = por %p178, %p179
      %s182 = sadd.s32 %s181, 1
      %p185 = scmp.eq.s32.totalorder %s16, 1
      %p186 = scmp.ne.s32.totalorder %s181, %s183
      %p187 = scmp.eq.s32.totalorder %s16, 0
      %p188 = por %p186, %p187
      %p189 = scmp.ne.s32.totalorder %s181, %s183
      %p190 = scmp.eq.s32.totalorder %s21, 1
      %p191 = por %p189, %p190
      %p192 = scmp.ne.s32.totalorder %s183, %s184
      %p193 = scmp.eq.s32.totalorder %s21, 0
      %p194 = por %p192, %p193
      %p195 = scmp.ne.s32.totalorder %s183, %s184
      %p196 = scmp.eq.s32.totalorder %s22, 1
      %p197 = por %p195, %p196
      %p199 = scmp.ne.s32.totalorder %s184, %s198
      %p200 = scmp.eq.s32.totalorder %s22, 0
      %p201 = por %p199, %p200
      %p202 = scmp.le.s32.totalorder 1, %s16
      %p203 = scmp.lt.s32.totalorder %s16, 3
      %p204 = pnand %p202, %p203
      %p205 = pneg %p204
      // Predicated region
      $region9: #{tpu_custom_call.1} parent=5 // pred_check
        _
      $region10: #{tpu_custom_call.1} parent=5 // pred_check_branch
        %207 = sbr.rel (%p204) target = $region12
      $region11: #{tpu_custom_call.1} parent=5 // pred_region
        %s208 = ssub.s32 %s16, 1
        // Predicated region
        $region13: #{tpu_custom_call.1} parent=11 // pred_check
          %p209 = pneg %p63
        $region14: #{tpu_custom_call.1} parent=11 // pred_check_branch
          %211 = sbr.rel (%p209) target = $region16
        $region15: #{tpu_custom_call.1} parent=11 // pred_region
          _
        $region16: #{tpu_custom_call.1} parent=11 // pred_fallthru
          _
        // Predicated region
        $region17: #{tpu_custom_call.1} parent=11 // pred_check
          %p212 = pneg %p84
        $region18: #{tpu_custom_call.1} parent=11 // pred_check_branch
          %214 = sbr.rel (%p212) target = $region20
        $region19: #{tpu_custom_call.1} parent=11 // pred_region
          _
        $region20: #{tpu_custom_call.1} parent=11 // pred_fallthru
          _
        // Predicated region
        $region21: #{tpu_custom_call.1} parent=11 // pred_check
          %p215 = pneg %p105
        $region22: #{tpu_custom_call.1} parent=11 // pred_check_branch
          %217 = sbr.rel (%p215) target = $region24
        $region23: #{tpu_custom_call.1} parent=11 // pred_region
          _
        $region24: #{tpu_custom_call.1} parent=11 // pred_fallthru
          _
        // Predicated region
        $region25: #{tpu_custom_call.1} parent=11 // pred_check
          %p218 = pneg %p126
        $region26: #{tpu_custom_call.1} parent=11 // pred_check_branch
          %220 = sbr.rel (%p218) target = $region28
        $region27: #{tpu_custom_call.1} parent=11 // pred_region
          _
        $region28: #{tpu_custom_call.1} parent=11 // pred_fallthru
          _
      $region12: #{tpu_custom_call.1} parent=5 // pred_fallthru
        _
      %p221 = scmp.lt.s32.totalorder %s16, 2
      // Predicated region
      $region29: #{tpu_custom_call.1} parent=5 // pred_check
        %p222 = pneg %p221
      $region30: #{tpu_custom_call.1} parent=5 // pred_check_branch
        %224 = sbr.rel (%p222) target = $region32
      $region31: #{tpu_custom_call.1} parent=5 // pred_region
        // Predicated region
        $region33: #{tpu_custom_call.1} parent=31 // pred_check
          %p225 = pneg %p36
        $region34: #{tpu_custom_call.1} parent=31 // pred_check_branch
          %227 = sbr.rel (%p225) target = $region36
        $region35: #{tpu_custom_call.1} parent=31 // pred_region
          %p228 = scmp.lt.s32.totalorder %s16, 1
          %s229 = scalar_select %p228, %s16, 1
          %s230 = smul.addr %s229, 8
          %s231 = smul.addr %s230, 8
          %s232 = scalar_lea.vmem %s0, %s231
        $region36: #{tpu_custom_call.1} parent=31 // pred_fallthru
          _
      $region32: #{tpu_custom_call.1} parent=5 // pred_fallthru
        _
      %p233 = scmp.le.s32.totalorder 1, %s16
      %p234 = scmp.lt.s32.totalorder %s16, 3
      %p235 = pnand %p233, %p234
      %p236 = pneg %p235
      // Predicated region
      $region37: #{tpu_custom_call.1} parent=5 // pred_check
        _
      $region38: #{tpu_custom_call.1} parent=5 // pred_check_branch
        %238 = sbr.rel (%p235) target = $region40
      $region39: #{tpu_custom_call.1} parent=5 // pred_region
        %s239 = ssub.s32 %s16, 1
        %p240 = scmp.lt.s32.totalorder %s21, 1
        %s241 = scalar_select %p240, %s21, 1
        %s242 = smul.addr %s241, 8
        %s243 = smul.addr %s242, 8
        %s244 = scalar_lea.vmem %s0, %s243
        %p245 = pneg %p42
        %p246 = pneg %p39
        %p247 = pneg %p63
        %p248 = pneg %p60
        %p249 = pneg %p84
        %p250 = pneg %p81
        %p251 = pneg %p105
        %p252 = pneg %p102
        %p253 = pneg %p126
        %p254 = pneg %p123
        %p255 = pneg %p152
        %p256 = pneg %p149
        %p257 = scmp.lt.s32.totalorder %s21, 1
        %s258 = scalar_select %p257, %s21, 1
        %s259 = smul.addr %s258, 8
        %s260 = smul.addr %s259, 8
        %s261 = scalar_lea.vmem %s5, %s260
        %p262 = pneg %p173
        %p263 = pneg %p170
        %p264 = pneg %p194
        %p265 = pneg %p191
        %p266 = scmp.lt.s32.totalorder %s21, 1
        %s267 = scalar_select %p266, %s21, 1
        %s268 = smul.addr %s267, 8
        %s269 = smul.addr %s268, 8
        %s270 = scalar_lea.vmem %s0, %s269
        %p271 = scmp.lt.s32.totalorder %s21, 1
        %s272 = scalar_select %p271, %s21, 1
        %s273 = smul.addr %s272, 8
        %s274 = smul.addr %s273, 8
        %s275 = scalar_lea.vmem %s5, %s274
        %p276 = scmp.eq.s32.totalorder %s21, 0
        // Predicated region
        $region41: #{tpu_custom_call.1} parent=39 // pred_check
          %p277 = pneg %p276
        $region42: #{tpu_custom_call.1} parent=39 // pred_check_branch
          %279 = sbr.rel (%p277) target = $region44
        $region43: #{tpu_custom_call.1} parent=39 // pred_region
          %vm280 = vcmask 31744
          %281 = vst.msk [vmem:[#allocation2] sm:$0xff] %vm280, 0.0
          %vm282 = vcmask 25600
          %283 = vst.msk [vmem:[#allocation2 + $0x8] sm:$0x3] %vm282, 0.0
          %284 = vst.msk [vmem:[#allocation2 + $0x10] sm:$0xff] %vm280, 0.0
          %285 = vst.msk [vmem:[#allocation2 + $0x18] sm:$0x3] %vm282, 0.0
          %286 = vst.msk [vmem:[#allocation2 + $0x20] sm:$0xff] %vm280, 0.0
          %287 = vst.msk [vmem:[#allocation2 + $0x28] sm:$0x3] %vm282, 0.0
          %288 = vst.msk [vmem:[#allocation2 + $0x30] sm:$0xff] %vm280, 0.0
          %289 = vst.msk [vmem:[#allocation2 + $0x38] sm:$0x3] %vm282, 0.0
          %290 = vst.msk [vmem:[#allocation2 + $0x40] sm:$0xff] %vm280, 0.0
          %291 = vst.msk [vmem:[#allocation2 + $0x48] sm:$0x3] %vm282, 0.0
          %292 = vst.msk [vmem:[#allocation2 + $0x50] sm:$0xff] %vm280, 0.0
          %293 = vst.msk [vmem:[#allocation2 + $0x58] sm:$0x3] %vm282, 0.0
          %294 = vst.msk [vmem:[#allocation2 + $0x60] sm:$0xff] %vm280, 0.0
          %295 = vst.msk [vmem:[#allocation2 + $0x68] sm:$0x3] %vm282, 0.0
          %296 = vst.msk [vmem:[#allocation2 + $0x70] sm:$0xff] %vm280, 0.0
          %297 = vst.msk [vmem:[#allocation2 + $0x78] sm:$0x3] %vm282, 0.0
          %298 = vst.msk [vmem:[#allocation2 + $0x80] sm:$0xff] %vm280, 0.0
          %299 = vst.msk [vmem:[#allocation2 + $0x88] sm:$0x3] %vm282, 0.0
          %300 = vst.msk [vmem:[#allocation2 + $0x90] sm:$0xff] %vm280, 0.0
          %301 = vst.msk [vmem:[#allocation2 + $0x98] sm:$0x3] %vm282, 0.0
          %vm302 = vcmask 24576
          %303 = vst.msk [vmem:[#allocation3] sm:$0x1] %vm302, 0.0
          %304 = vst.msk [vmem:[#allocation5] sm:$0x1] %vm302, 0.0
        $region44: #{tpu_custom_call.1} parent=39 // pred_fallthru
          _
        %v305 = vld [vmem:[%s270] sm:$0xff]
        %v306 = vld [vmem:[%s270 + $0x8] sm:$0xff]
        %v307 = vld [vmem:[%s270 + $0x10] sm:$0xff]
        %v308 = vld [vmem:[%s270 + $0x18] sm:$0xff]
        %v309 = vld [vmem:[%s270 + $0x20] sm:$0xff]
        %v310 = vld [vmem:[%s270 + $0x28] sm:$0xff]
        %v311 = vld [vmem:[%s270 + $0x30] sm:$0xff]
        %v312 = vld [vmem:[%s270 + $0x38] sm:$0xff]
        %v313 = vld [vmem:[%s1] sm:$0xf]
        %v314 = vld [vmem:[%s2] sm:$0x1]
        %v316 = vlaneseq
        %v317 = vshrl.u32 %v316, 7
        %v318 = vsub.s32 0, %v317
        %v319 = vrot.slane %v314, %v318
        %vm321 = vcmask 31744
        %v323 = vsel %vm321, %v305, 0
        %v326 = vsel %vm321, %v306, 0
        %v329 = vsel %vm321, %v307, 0
        %v332 = vsel %vm321, %v308, 0
        %v335 = vsel %vm321, %v309, 0
        %v338 = vsel %vm321, %v310, 0
        %v341 = vsel %vm321, %v311, 0
        %v344 = vsel %vm321, %v312, 0
        %vm346 = vcmask 1043456
        %v348 = vsel %vm346, %v313, 0
        %350 = vmatprep.subr.mxu0 0.0
        %351 = vmatpush1.msra.mxu0 %v348
        %352 = vmatprep.subr.mxu0 0.0
        %353 = vmatpush1.msra.mxu0 0.0
        %354 = vmatprep.subr.mxu0 0.0
        %355 = vmatpush1.msra.mxu0 0.0
        %356 = vmatprep.subr.mxu0 0.0
        %357 = vmatpush1.msra.mxu0 0.0
        %358 = vmatprep.subr.mxu0 0.0
        %359 = vmatpush1.msra.mxu0 0.0
        %360 = vmatprep.subr.mxu0 0.0
        %361 = vmatpush1.msra.mxu0 0.0
        %362 = vmatprep.subr.mxu0 0.0
        %363 = vmatpush1.msra.mxu0 0.0
        %364 = vmatprep.subr.mxu0 0.0
        %365 = vmatpush1.msra.mxu0 0.0
        %366 = vmatprep.subr.mxu0 0.0
        %367 = vmatpush1.msra.mxu0 0.0
        %368 = vmatprep.subr.mxu0 0.0
        %369 = vmatpush1.msra.mxu0 0.0
        %370 = vmatprep.subr.mxu0 0.0
        %371 = vmatpush1.msra.mxu0 0.0
        %372 = vmatprep.subr.mxu0 0.0
        %373 = vmatpush1.msra.mxu0 0.0
        %374 = vmatprep.subr.mxu0 0.0
        %375 = vmatpush1.msra.mxu0 0.0
        %376 = vmatprep.subr.mxu0 0.0
        %377 = vmatpush1.msra.mxu0 0.0
        %378 = vmatprep.subr.mxu0 0.0
        %379 = vmatpush1.msra.mxu0 0.0
        %380 = vmatprep.subr.mxu0 0.0
        %381 = vmatpush1.msra.mxu0 0.0
        %382 = vmatprep.subr.mxu0 0.0
        %383 = vmatpush1.msra.mxu0 0.0
        %384 = vmatprep.subr.mxu0 0.0
        %385 = vmatpush1.msra.mxu0 0.0
        %386 = vmatprep.subr.mxu0 0.0
        %387 = vmatpush1.msra.mxu0 0.0
        %388 = vmatprep.subr.mxu0 0.0
        %389 = vmatpush1.msra.mxu0 0.0
        %390 = vmatprep.subr.mxu0 0.0
        %391 = vmatpush1.msra.mxu0 0.0
        %392 = vmatprep.subr.mxu0 0.0
        %393 = vmatpush1.msra.mxu0 0.0
        %394 = vmatprep.subr.mxu0 0.0
        %395 = vmatpush1.msra.mxu0 0.0
        %396 = vmatprep.subr.mxu0 0.0
        %397 = vmatpush1.msra.mxu0 0.0
        %398 = vmatprep.subr.mxu0 0.0
        %399 = vmatpush1.msra.mxu0 0.0
        %400 = vmatprep.subr.mxu0 0.0
        %401 = vmatpush1.msra.mxu0 0.0
        %402 = vmatprep.subr.mxu0 0.0
        %403 = vmatpush1.msra.mxu0 0.0
        %404 = vmatprep.subr.mxu0 0.0
        %405 = vmatpush1.msra.mxu0 0.0
        %406 = vmatprep.subr.mxu0 0.0
        %407 = vmatpush1.msra.mxu0 0.0
        %408 = vmatprep.subr.mxu0 0.0
        %409 = vmatpush1.msra.mxu0 0.0
        %410 = vmatprep.subr.mxu0 0.0
        %411 = vmatpush1.msra.mxu0 0.0
        %412 = vmatprep.subr.mxu0 0.0
        %413 = vmatpush1.msra.mxu0 0.0
        %414 = vmatprep.mubr.f32.mxu0 0.0
        %415 = vmatmul.mubr.f32.gmra.mrb[0].mxu0 %v323
        %v416 = vpop.f32.mrb[0].mxu0
        %v417 = vadd.f32 %v319, %v416
        %v418 = vpop.f32.mrb[0].mxu0
        %419 = vmatprep.mubr.f32.mxu0 0.0
        %420 = vmatmul.mubr.f32.gmra.mrb[0].mxu0 %v326
        %v421 = vpop.f32.mrb[0].mxu0
        %v422 = vadd.f32 %v319, %v421
        %v423 = vpop.f32.mrb[0].mxu0
        %424 = vmatprep.mubr.f32.mxu0 0.0
        %425 = vmatmul.mubr.f32.gmra.mrb[0].mxu0 %v329
        %v426 = vpop.f32.mrb[0].mxu0
        %v427 = vadd.f32 %v319, %v426
        %v428 = vpop.f32.mrb[0].mxu0
        %429 = vmatprep.mubr.f32.mxu0 0.0
        %430 = vmatmul.mubr.f32.gmra.mrb[0].mxu0 %v332
        %v431 = vpop.f32.mrb[0].mxu0
        %v432 = vadd.f32 %v319, %v431
        %v433 = vpop.f32.mrb[0].mxu0
        %434 = vmatprep.mubr.f32.mxu0 0.0
        %435 = vmatmul.mubr.f32.gmra.mrb[0].mxu0 %v335
        %v436 = vpop.f32.mrb[0].mxu0
        %v437 = vadd.f32 %v319, %v436
        %v438 = vpop.f32.mrb[0].mxu0
        %439 = vmatprep.mubr.f32.mxu0 0.0
        %440 = vmatmul.mubr.f32.gmra.mrb[0].mxu0 %v338
        %v441 = vpop.f32.mrb[0].mxu0
        %v442 = vadd.f32 %v319, %v441
        %v443 = vpop.f32.mrb[0].mxu0
        %444 = vmatprep.mubr.f32.mxu0 0.0
        %445 = vmatmul.mubr.f32.gmra.mrb[0].mxu0 %v341
        %v446 = vpop.f32.mrb[0].mxu0
        %v447 = vadd.f32 %v319, %v446
        %v448 = vpop.f32.mrb[0].mxu0
        %449 = vmatprep.mubr.f32.mxu0 0.0
        %450 = vmatmul.mubr.f32.gmra.mrb[0].mxu0 %v344
        %v451 = vpop.f32.mrb[0].mxu0
        %v452 = vadd.f32 %v319, %v451
        %v453 = vpop.f32.mrb[0].mxu0
        %454 = vdwg.mxu0
        %vm455 = vcmp.gt.f32.partialorder %v417, 0.0
        %vm456 = vcmp.gt.f32.partialorder %v422, 0.0
        %vm457 = vcmp.gt.f32.partialorder %v427, 0.0
        %vm458 = vcmp.gt.f32.partialorder %v432, 0.0
        %vm459 = vcmp.gt.f32.partialorder %v437, 0.0
        %vm460 = vcmp.gt.f32.partialorder %v442, 0.0
        %vm461 = vcmp.gt.f32.partialorder %v447, 0.0
        %vm462 = vcmp.gt.f32.partialorder %v452, 0.0
        %v463 = vmin.f32 %v417, 0.0
        %v464 = vmin.f32 %v422, 0.0
        %v465 = vmin.f32 %v427, 0.0
        %v466 = vmin.f32 %v432, 0.0
        %v467 = vmin.f32 %v437, 0.0
        %v468 = vmin.f32 %v442, 0.0
        %v469 = vmin.f32 %v447, 0.0
        %v470 = vmin.f32 %v452, 0.0
        %v471 = vmul.f32 %v463, 1.442695
        %v472 = vpow.pop %v471
        %v473 = vmul.f32 %v464, 1.442695
        %v474 = vpow.pop %v473
        %v475 = vmul.f32 %v465, 1.442695
        %v476 = vpow.pop %v475
        %v477 = vmul.f32 %v466, 1.442695
        %v478 = vpow.pop %v477
        %v479 = vmul.f32 %v467, 1.442695
        %v480 = vpow.pop %v479
        %v481 = vmul.f32 %v468, 1.442695
        %v482 = vpow.pop %v481
        %v483 = vmul.f32 %v469, 1.442695
        %v484 = vpow.pop %v483
        %v485 = vmul.f32 %v470, 1.442695
        %v486 = vpow.pop %v485
        %v487 = vsub.f32 %v472, 1.0
        %v488 = vsub.f32 %v474, 1.0
        %v489 = vsub.f32 %v476, 1.0
        %v490 = vsub.f32 %v478, 1.0
        %v491 = vsub.f32 %v480, 1.0
        %v492 = vsub.f32 %v482, 1.0
        %v493 = vsub.f32 %v484, 1.0
        %v494 = vsub.f32 %v486, 1.0
        %v495 = vsel %vm455, %v417, %v487
        %v496 = vsel %vm456, %v422, %v488
        %v497 = vsel %vm457, %v427, %v489
        %v498 = vsel %vm458, %v432, %v490
        %v499 = vsel %vm459, %v437, %v491
        %v500 = vsel %vm460, %v442, %v492
        %v501 = vsel %vm461, %v447, %v493
        %v502 = vsel %vm462, %v452, %v494
        %s503 = scalar_lea.vmem [#allocation2], 16
        %504 = vst.msk [vmem:[%s503 + $0x1] sm:$0xff] %vm321, %v495
        %505 = vst.msk [vmem:[%s503 + $0x11] sm:$0xff] %vm321, %v496
        %506 = vst.msk [vmem:[%s503 + $0x21] sm:$0xff] %vm321, %v497
        %507 = vst.msk [vmem:[%s503 + $0x31] sm:$0xff] %vm321, %v498
        %508 = vst.msk [vmem:[%s503 + $0x41] sm:$0xff] %vm321, %v499
        %509 = vst.msk [vmem:[%s503 + $0x51] sm:$0xff] %vm321, %v500
        %510 = vst.msk [vmem:[%s503 + $0x61] sm:$0xff] %vm321, %v501
        %511 = vst.msk [vmem:[%s503 + $0x71] sm:$0xff] %vm321, %v502
        %v512 = vld [vmem:[%s3] sm:$0xff]
        %v513 = vld [vmem:[%s3 + $0x8] sm:$0x1]
        %v514 = vld [vmem:[#allocation2] sm:$0xff]
        %v515 = vld [vmem:[#allocation2 + $0x10] sm:$0xff]
        %v516 = vld [vmem:[#allocation2 + $0x20] sm:$0xff]
        %v517 = vld [vmem:[#allocation2 + $0x30] sm:$0xff]
        %v518 = vld [vmem:[#allocation2 + $0x40] sm:$0xff]
        %v519 = vld [vmem:[#allocation2 + $0x50] sm:$0xff]
        %v520 = vld [vmem:[#allocation2 + $0x60] sm:$0xff]
        %v521 = vld [vmem:[#allocation2 + $0x70] sm:$0xff]
        %v522 = vlaneseq
        %v523 = vshrl.u32 %v522, 7
        %v524 = vsub.s32 0, %v523
        %v525 = vrot.slane %v512, %v524
        %v526 = vmul.f32 %v514, %v525
        %v527 = vmul.f32 %v515, %v525
        %v528 = vmul.f32 %v516, %v525
        %v529 = vmul.f32 %v517, %v525
        %v530 = vmul.f32 %v518, %v525
        %v531 = vmul.f32 %v519, %v525
        %v532 = vmul.f32 %v520, %v525
        %v533 = vmul.f32 %v521, %v525
        %v534 = vld [vmem:[#allocation2 + $0x1] sm:$0xff]
        %v535 = vld [vmem:[#allocation2 + $0x11] sm:$0xff]
        %v536 = vld [vmem:[#allocation2 + $0x21] sm:$0xff]
        %v537 = vld [vmem:[#allocation2 + $0x31] sm:$0xff]
        %v538 = vld [vmem:[#allocation2 + $0x41] sm:$0xff]
        %v539 = vld [vmem:[#allocation2 + $0x51] sm:$0xff]
        %v540 = vld [vmem:[#allocation2 + $0x61] sm:$0xff]
        %v541 = vld [vmem:[#allocation2 + $0x71] sm:$0xff]
        %v542 = vlaneseq
        %v543 = vshrl.u32 %v542, 7
        %v544 = vsub.s32 1, %v543
        %v545 = vrot.slane %v512, %v544
        %v546 = vmul.f32 %v534, %v545
        %v547 = vmul.f32 %v535, %v545
        %v548 = vmul.f32 %v536, %v545
        %v549 = vmul.f32 %v537, %v545
        %v550 = vmul.f32 %v538, %v545
        %v551 = vmul.f32 %v539, %v545
        %v552 = vmul.f32 %v540, %v545
        %v553 = vmul.f32 %v541, %v545
        %v554 = vadd.f32 %v526, %v546
        %v555 = vadd.f32 %v527, %v547
        %v556 = vadd.f32 %v528, %v548
        %v557 = vadd.f32 %v529, %v549
        %v558 = vadd.f32 %v530, %v550
        %v559 = vadd.f32 %v531, %v551
        %v560 = vadd.f32 %v532, %v552
        %v561 = vadd.f32 %v533, %v553
        %v562 = vld [vmem:[#allocation2 + $0x2] sm:$0xff]
        %v563 = vld [vmem:[#allocation2 + $0x12] sm:$0xff]
        %v564 = vld [vmem:[#allocation2 + $0x22] sm:$0xff]
        %v565 = vld [vmem:[#allocation2 + $0x32] sm:$0xff]
        %v566 = vld [vmem:[#allocation2 + $0x42] sm:$0xff]
        %v567 = vld [vmem:[#allocation2 + $0x52] sm:$0xff]
        %v568 = vld [vmem:[#allocation2 + $0x62] sm:$0xff]
        %v569 = vld [vmem:[#allocation2 + $0x72] sm:$0xff]
        %v570 = vlaneseq
        %v571 = vshrl.u32 %v570, 7
        %v572 = vsub.s32 2, %v571
        %v573 = vrot.slane %v512, %v572
        %v574 = vmul.f32 %v562, %v573
        %v575 = vmul.f32 %v563, %v573
        %v576 = vmul.f32 %v564, %v573
        %v577 = vmul.f32 %v565, %v573
        %v578 = vmul.f32 %v566, %v573
        %v579 = vmul.f32 %v567, %v573
        %v580 = vmul.f32 %v568, %v573
        %v581 = vmul.f32 %v569, %v573
        %v582 = vadd.f32 %v554, %v574
        %v583 = vadd.f32 %v555, %v575
        %v584 = vadd.f32 %v556, %v576
        %v585 = vadd.f32 %v557, %v577
        %v586 = vadd.f32 %v558, %v578
        %v587 = vadd.f32 %v559, %v579
        %v588 = vadd.f32 %v560, %v580
        %v589 = vadd.f32 %v561, %v581
        %v590 = vld [vmem:[%s503] sm:$0xff]
        %v591 = vld [vmem:[%s503 + $0x10] sm:$0xff]
        %v592 = vld [vmem:[%s503 + $0x20] sm:$0xff]
        %v593 = vld [vmem:[%s503 + $0x30] sm:$0xff]
        %v594 = vld [vmem:[%s503 + $0x40] sm:$0xff]
        %v595 = vld [vmem:[%s503 + $0x50] sm:$0xff]
        %v596 = vld [vmem:[%s503 + $0x60] sm:$0xff]
        %v597 = vld [vmem:[%s503 + $0x70] sm:$0xff]
        %v598 = vlaneseq
        %v599 = vshrl.u32 %v598, 7
        %v600 = vsub.s32 3, %v599
        %v601 = vrot.slane %v512, %v600
        %v602 = vmul.f32 %v590, %v601
        %v603 = vmul.f32 %v591, %v601
        %v604 = vmul.f32 %v592, %v601
        %v605 = vmul.f32 %v593, %v601
        %v606 = vmul.f32 %v594, %v601
        %v607 = vmul.f32 %v595, %v601
        %v608 = vmul.f32 %v596, %v601
        %v609 = vmul.f32 %v597, %v601
        %v610 = vadd.f32 %v582, %v602
        %v611 = vadd.f32 %v583, %v603
        %v612 = vadd.f32 %v584, %v604
        %v613 = vadd.f32 %v585, %v605
        %v614 = vadd.f32 %v586, %v606
        %v615 = vadd.f32 %v587, %v607
        %v616 = vadd.f32 %v588, %v608
        %v617 = vadd.f32 %v589, %v609
        %v618 = vld [vmem:[%s503 + $0x1] sm:$0xff]
        %v619 = vld [vmem:[%s503 + $0x11] sm:$0xff]
        %v620 = vld [vmem:[%s503 + $0x21] sm:$0xff]
        %v621 = vld [vmem:[%s503 + $0x31] sm:$0xff]
        %v622 = vld [vmem:[%s503 + $0x41] sm:$0xff]
        %v623 = vld [vmem:[%s503 + $0x51] sm:$0xff]
        %v624 = vld [vmem:[%s503 + $0x61] sm:$0xff]
        %v625 = vld [vmem:[%s503 + $0x71] sm:$0xff]
        %v626 = vlaneseq
        %v627 = vshrl.u32 %v626, 7
        %v628 = vsub.s32 4, %v627
        %v629 = vrot.slane %v512, %v628
        %v630 = vmul.f32 %v618, %v629
        %v631 = vmul.f32 %v619, %v629
        %v632 = vmul.f32 %v620, %v629
        %v633 = vmul.f32 %v621, %v629
        %v634 = vmul.f32 %v622, %v629
        %v635 = vmul.f32 %v623, %v629
        %v636 = vmul.f32 %v624, %v629
        %v637 = vmul.f32 %v625, %v629
        %v638 = vadd.f32 %v610, %v630
        %v639 = vadd.f32 %v611, %v631
        %v640 = vadd.f32 %v612, %v632
        %v641 = vadd.f32 %v613, %v633
        %v642 = vadd.f32 %v614, %v634
        %v643 = vadd.f32 %v615, %v635
        %v644 = vadd.f32 %v616, %v636
        %v645 = vadd.f32 %v617, %v637
        %v646 = vld [vmem:[%s503 + $0x2] sm:$0xff]
        %v647 = vld [vmem:[%s503 + $0x12] sm:$0xff]
        %v648 = vld [vmem:[%s503 + $0x22] sm:$0xff]
        %v649 = vld [vmem:[%s503 + $0x32] sm:$0xff]
        %v650 = vld [vmem:[%s503 + $0x42] sm:$0xff]
        %v651 = vld [vmem:[%s503 + $0x52] sm:$0xff]
        %v652 = vld [vmem:[%s503 + $0x62] sm:$0xff]
        %v653 = vld [vmem:[%s503 + $0x72] sm:$0xff]
        %v654 = vlaneseq
        %v655 = vshrl.u32 %v654, 7
        %v656 = vsub.s32 5, %v655
        %v657 = vrot.slane %v512, %v656
        %v658 = vmul.f32 %v646, %v657
        %v659 = vmul.f32 %v647, %v657
        %v660 = vmul.f32 %v648, %v657
        %v661 = vmul.f32 %v649, %v657
        %v662 = vmul.f32 %v650, %v657
        %v663 = vmul.f32 %v651, %v657
        %v664 = vmul.f32 %v652, %v657
        %v665 = vmul.f32 %v653, %v657
        %v666 = vadd.f32 %v638, %v658
        %v667 = vadd.f32 %v639, %v659
        %v668 = vadd.f32 %v640, %v660
        %v669 = vadd.f32 %v641, %v661
        %v670 = vadd.f32 %v642, %v662
        %v671 = vadd.f32 %v643, %v663
        %v672 = vadd.f32 %v644, %v664
        %v673 = vadd.f32 %v645, %v665
        %s674 = scalar_lea.vmem [#allocation2], 32
        %v675 = vld [vmem:[%s674] sm:$0xff]
        %v676 = vld [vmem:[%s674 + $0x10] sm:$0xff]
        %v677 = vld [vmem:[%s674 + $0x20] sm:$0xff]
        %v678 = vld [vmem:[%s674 + $0x30] sm:$0xff]
        %v679 = vld [vmem:[%s674 + $0x40] sm:$0xff]
        %v680 = vld [vmem:[%s674 + $0x50] sm:$0xff]
        %v681 = vld [vmem:[%s674 + $0x60] sm:$0xff]
        %v682 = vld [vmem:[%s674 + $0x70] sm:$0xff]
        %v683 = vlaneseq
        %v684 = vshrl.u32 %v683, 7
        %v685 = vsub.s32 6, %v684
        %v686 = vrot.slane %v512, %v685
        %v687 = vmul.f32 %v675, %v686
        %v688 = vmul.f32 %v676, %v686
        %v689 = vmul.f32 %v677, %v686
        %v690 = vmul.f32 %v678, %v686
        %v691 = vmul.f32 %v679, %v686
        %v692 = vmul.f32 %v680, %v686
        %v693 = vmul.f32 %v681, %v686
        %v694 = vmul.f32 %v682, %v686
        %v695 = vadd.f32 %v666, %v687
        %v696 = vadd.f32 %v667, %v688
        %v697 = vadd.f32 %v668, %v689
        %v698 = vadd.f32 %v669, %v690
        %v699 = vadd.f32 %v670, %v691
        %v700 = vadd.f32 %v671, %v692
        %v701 = vadd.f32 %v672, %v693
        %v702 = vadd.f32 %v673, %v694
        %v703 = vld [vmem:[%s674 + $0x1] sm:$0xff]
        %v704 = vld [vmem:[%s674 + $0x11] sm:$0xff]
        %v705 = vld [vmem:[%s674 + $0x21] sm:$0xff]
        %v706 = vld [vmem:[%s674 + $0x31] sm:$0xff]
        %v707 = vld [vmem:[%s674 + $0x41] sm:$0xff]
        %v708 = vld [vmem:[%s674 + $0x51] sm:$0xff]
        %v709 = vld [vmem:[%s674 + $0x61] sm:$0xff]
        %v710 = vld [vmem:[%s674 + $0x71] sm:$0xff]
        %v711 = vlaneseq
        %v712 = vshrl.u32 %v711, 7
        %v713 = vsub.s32 7, %v712
        %v714 = vrot.slane %v512, %v713
        %v715 = vmul.f32 %v703, %v714
        %v716 = vmul.f32 %v704, %v714
        %v717 = vmul.f32 %v705, %v714
        %v718 = vmul.f32 %v706, %v714
        %v719 = vmul.f32 %v707, %v714
        %v720 = vmul.f32 %v708, %v714
        %v721 = vmul.f32 %v709, %v714
        %v722 = vmul.f32 %v710, %v714
        %v723 = vadd.f32 %v695, %v715
        %v724 = vadd.f32 %v696, %v716
        %v725 = vadd.f32 %v697, %v717
        %v726 = vadd.f32 %v698, %v718
        %v727 = vadd.f32 %v699, %v719
        %v728 = vadd.f32 %v700, %v720
        %v729 = vadd.f32 %v701, %v721
        %v730 = vadd.f32 %v702, %v722
        %v731 = vld [vmem:[%s674 + $0x2] sm:$0xff]
        %v732 = vld [vmem:[%s674 + $0x12] sm:$0xff]
        %v733 = vld [vmem:[%s674 + $0x22] sm:$0xff]
        %v734 = vld [vmem:[%s674 + $0x32] sm:$0xff]
        %v735 = vld [vmem:[%s674 + $0x42] sm:$0xff]
        %v736 = vld [vmem:[%s674 + $0x52] sm:$0xff]
        %v737 = vld [vmem:[%s674 + $0x62] sm:$0xff]
        %v738 = vld [vmem:[%s674 + $0x72] sm:$0xff]
        %v739 = vlaneseq
        %v740 = vshrl.u32 %v739, 7
        %v741 = vsub.s32 0, %v740
        %v742 = vrot.slane %v513, %v741
        %v743 = vmul.f32 %v731, %v742
        %v744 = vmul.f32 %v732, %v742
        %v745 = vmul.f32 %v733, %v742
        %v746 = vmul.f32 %v734, %v742
        %v747 = vmul.f32 %v735, %v742
        %v748 = vmul.f32 %v736, %v742
        %v749 = vmul.f32 %v737, %v742
        %v750 = vmul.f32 %v738, %v742
        %v751 = vadd.f32 %v723, %v743
        %v752 = vadd.f32 %v724, %v744
        %v753 = vadd.f32 %v725, %v745
        %v754 = vadd.f32 %v726, %v746
        %v755 = vadd.f32 %v727, %v747
        %v756 = vadd.f32 %v728, %v748
        %v757 = vadd.f32 %v729, %v749
        %v758 = vadd.f32 %v730, %v750
        %v759 = vld [vmem:[%s4] sm:$0x1]
        %v761 = vlaneseq
        %v762 = vshrl.u32 %v761, 7
        %v763 = vsub.s32 0, %v762
        %v764 = vrot.slane %v759, %v763
        %v766 = vadd.f32 %v751, %v764
        %v767 = vadd.f32 %v752, %v764
        %v768 = vadd.f32 %v753, %v764
        %v769 = vadd.f32 %v754, %v764
        %v770 = vadd.f32 %v755, %v764
        %v771 = vadd.f32 %v756, %v764
        %v772 = vadd.f32 %v757, %v764
        %v773 = vadd.f32 %v758, %v764
        %774 = vst.msk [vmem:[%s275] sm:$0xff] %vm321, %v766
        %775 = vst.msk [vmem:[%s275 + $0x8] sm:$0xff] %vm321, %v767
        %776 = vst.msk [vmem:[%s275 + $0x10] sm:$0xff] %vm321, %v768
        %777 = vst.msk [vmem:[%s275 + $0x18] sm:$0xff] %vm321, %v769
        %778 = vst.msk [vmem:[%s275 + $0x20] sm:$0xff] %vm321, %v770
        %779 = vst.msk [vmem:[%s275 + $0x28] sm:$0xff] %vm321, %v771
        %780 = vst.msk [vmem:[%s275 + $0x30] sm:$0xff] %vm321, %v772
        %781 = vst.msk [vmem:[%s275 + $0x38] sm:$0xff] %vm321, %v773
        %v782 = vld [vmem:[#allocation3] sm:$0x1]
        %v783 = vsel %vm321, %v766, 0.0
        %v784 = vsel %vm321, %v767, 0.0
        %v785 = vadd.f32 %v783, %v784
        %v786 = vsel %vm321, %v768, 0.0
        %v787 = vadd.f32 %v785, %v786
        %v788 = vsel %vm321, %v769, 0.0
        %v789 = vadd.f32 %v787, %v788
        %v790 = vsel %vm321, %v770, 0.0
        %v791 = vadd.f32 %v789, %v790
        %v792 = vsel %vm321, %v771, 0.0
        %v793 = vadd.f32 %v791, %v792
        %v794 = vsel %vm321, %v772, 0.0
        %v795 = vadd.f32 %v793, %v794
        %v796 = vsel %vm321, %v773, 0.0
        %v797 = vadd.f32 %v795, %v796
        %v798 = vrot.slane %v797, 4
        %v799 = vadd.f32 %v797, %v798
        %v800 = vrot.slane %v799, 2
        %v801 = vadd.f32 %v799, %v800
        %v802 = vrot.slane %v801, 1
        %v803 = vadd.f32 %v801, %v802
        %v804 = vadd.f32 %v782, %v803
        %vm805 = vcmask 24576
        %806 = vst.msk [vmem:[#allocation3] sm:$0x1] %vm805, %v804
        %v807 = vld [vmem:[#allocation5] sm:$0x1]
        %v808 = vmul.f32 %v766, %v766
        %v809 = vmul.f32 %v767, %v767
        %v810 = vmul.f32 %v768, %v768
        %v811 = vmul.f32 %v769, %v769
        %v812 = vmul.f32 %v770, %v770
        %v813 = vmul.f32 %v771, %v771
        %v814 = vmul.f32 %v772, %v772
        %v815 = vmul.f32 %v773, %v773
        %v816 = vsel %vm321, %v808, 0.0
        %v817 = vsel %vm321, %v809, 0.0
        %v818 = vadd.f32 %v816, %v817
        %v819 = vsel %vm321, %v810, 0.0
        %v820 = vadd.f32 %v818, %v819
        %v821 = vsel %vm321, %v811, 0.0
        %v822 = vadd.f32 %v820, %v821
        %v823 = vsel %vm321, %v812, 0.0
        %v824 = vadd.f32 %v822, %v823
        %v825 = vsel %vm321, %v813, 0.0
        %v826 = vadd.f32 %v824, %v825
        %v827 = vsel %vm321, %v814, 0.0
        %v828 = vadd.f32 %v826, %v827
        %v829 = vsel %vm321, %v815, 0.0
        %v830 = vadd.f32 %v828, %v829
        %v831 = vrot.slane %v830, 4
        %v832 = vadd.f32 %v830, %v831
        %v833 = vrot.slane %v832, 2
        %v834 = vadd.f32 %v832, %v833
        %v835 = vrot.slane %v834, 1
        %v836 = vadd.f32 %v834, %v835
        %v837 = vadd.f32 %v807, %v836
        %838 = vst.msk [vmem:[#allocation5] sm:$0x1] %vm805, %v837
        %p839 = scmp.lt.s32.totalorder %s21, 1
        %s840 = scalar_select %p839, %s21, 1
        %s841 = smul.addr %s840, 8
        %s842 = smul.addr %s841, 8
        %s843 = scalar_lea.vmem %s5, %s842
        // Predicated region
        $region45: #{tpu_custom_call.1} parent=39 // pred_check
          %p844 = pneg %p149
        $region46: #{tpu_custom_call.1} parent=39 // pred_check_branch
          %846 = sbr.rel (%p844) target = $region48
        $region47: #{tpu_custom_call.1} parent=39 // pred_region
          _
        $region48: #{tpu_custom_call.1} parent=39 // pred_fallthru
          _
        // Predicated region
        $region49: #{tpu_custom_call.1} parent=39 // pred_check
          %p847 = pneg %p170
        $region50: #{tpu_custom_call.1} parent=39 // pred_check_branch
          %849 = sbr.rel (%p847) target = $region52
        $region51: #{tpu_custom_call.1} parent=39 // pred_region
          %s851 = ssub.s32 16, 16
          %852 = vsyncadd [#allocation4], %s851
          %s854 = sshll.u32 [#allocation3], 4
          %s855 = int_to_ptr.vmem [resolvable:$true] %s854
          %857 = dma.vmem_to_hbm [thread:$0]  %s855, 16, %s6, [#allocation4]
        $region52: #{tpu_custom_call.1} parent=39 // pred_fallthru
          _
        // Predicated region
        $region53: #{tpu_custom_call.1} parent=39 // pred_check
          %p858 = pneg %p191
        $region54: #{tpu_custom_call.1} parent=39 // pred_check_branch
          %860 = sbr.rel (%p858) target = $region56
        $region55: #{tpu_custom_call.1} parent=39 // pred_region
          %s862 = ssub.s32 16, 16
          %863 = vsyncadd [#allocation6], %s862
          %s865 = sshll.u32 [#allocation5], 4
          %s866 = int_to_ptr.vmem [resolvable:$true] %s865
          %868 = dma.vmem_to_hbm [thread:$0]  %s866, 16, %s7, [#allocation6]
        $region56: #{tpu_custom_call.1} parent=39 // pred_fallthru
          _
        // Predicated region
        $region57: #{tpu_custom_call.1} parent=39 // pred_check
          %p869 = pneg %p170
        $region58: #{tpu_custom_call.1} parent=39 // pred_check_branch
          %871 = sbr.rel (%p869) target = $region60
        $region59: #{tpu_custom_call.1} parent=39 // pred_region
          %872 = dma.done [#allocation4], 16
        $region60: #{tpu_custom_call.1} parent=39 // pred_fallthru
          _
        // Predicated region
        $region61: #{tpu_custom_call.1} parent=39 // pred_check
          %p873 = pneg %p191
        $region62: #{tpu_custom_call.1} parent=39 // pred_check_branch
          %875 = sbr.rel (%p873) target = $region64
        $region63: #{tpu_custom_call.1} parent=39 // pred_region
          %876 = dma.done [#allocation6], 16
        $region64: #{tpu_custom_call.1} parent=39 // pred_fallthru
          _
      $region40: #{tpu_custom_call.1} parent=5 // pred_fallthru
        _
      %p877 = scmp.le.s32.totalorder 2, %s16
      // Predicated region
      $region65: #{tpu_custom_call.1} parent=5 // pred_check
        %p878 = pneg %p877
      $region66: #{tpu_custom_call.1} parent=5 // pred_check_branch
        %880 = sbr.rel (%p878) target = $region68
      $region67: #{tpu_custom_call.1} parent=5 // pred_region
        %s881 = ssub.s32 %s16, 2
        // Predicated region
        $region69: #{tpu_custom_call.1} parent=67 // pred_check
          %p882 = pneg %p155
        $region70: #{tpu_custom_call.1} parent=67 // pred_check_branch
          %884 = sbr.rel (%p882) target = $region72
        $region71: #{tpu_custom_call.1} parent=67 // pred_region
          %p885 = scmp.lt.s32.totalorder %s22, 1
          %s886 = scalar_select %p885, %s22, 1
          %s887 = smul.addr %s886, 8
          %s888 = smul.addr %s887, 8
          %s889 = scalar_lea.vmem %s5, %s888
        $region72: #{tpu_custom_call.1} parent=67 // pred_fallthru
          _
      $region68: #{tpu_custom_call.1} parent=5 // pred_fallthru
        _
    $region6: #{tpu_custom_call.1} parent=1 // loop_footer
      %s20 = sadd.s32 1, %s16
    $region7: #{tpu_custom_call.1} parent=1 // loop_footer_branch
      %15 = sbr.rel target = $region3
    $region8: #{tpu_custom_call.1} parent=1 // loop_exit
      _
    %890 = vsyncpa [#allocation4], 1
    %s891 = scalar_lea.sflag [#allocation4], 1
    %892 = vsyncpa %s891, 1
    %893 = vsyncpa [#allocation6], 1

</llo_original>
